<compile_context>
chip_gen: v5e
topology: v5e:2x2
jax: 0.10.0
libtpu: 0.0.40
codegen_flags: <defaults>
</compile_context>

<pallas_src>
import functools

import jax
import jax.numpy as jnp
from jax.experimental import pallas as pl
from jax.experimental.pallas import tpu as pltpu

LN_EPS = 1e-5  # PyTorch nn.LayerNorm default


def _round_up(x, m):
    return (x + m - 1) // m * m


def _ln_relu(t, gamma, beta):
    """Single-pass LayerNorm (sum + sum-of-squares) followed by ReLU. f32."""
    n = t.shape[-1]
    inv_n = 1.0 / n
    s1 = jnp.sum(t, axis=-1, keepdims=True)
    s2 = jnp.sum(t * t, axis=-1, keepdims=True)
    mu = s1 * inv_n
    var = jnp.maximum(s2 * inv_n - mu * mu, 0.0)
    y = (t - mu) * jax.lax.rsqrt(var + LN_EPS) * gamma + beta
    return jnp.maximum(y, 0.0)


def actor_kernel(x_ref, w1_ref, w2_ref, w3_ref, wh_ref, sp_ref, out_ref,
                 *, h, h2, a):
    """One batch tile: 3x [Linear -> LN -> ReLU] + fused (mean|log_std) head."""
    f32 = jnp.float32
    bf16 = jnp.bfloat16

    # Packed small params (f32): rows are
    #   0:b1 1:g1 2:be1 | 3:b2 4:g2 5:be2 | 6:b3 7:g3 8:be3 | 9:bh(head bias)
    b1, g1, be1 = sp_ref[0:1, 0:h], sp_ref[1:2, 0:h], sp_ref[2:3, 0:h]
    b2, g2, be2 = sp_ref[3:4, 0:h], sp_ref[4:5, 0:h], sp_ref[5:6, 0:h]
    b3, g3, be3 = sp_ref[6:7, 0:h2], sp_ref[7:8, 0:h2], sp_ref[8:9, 0:h2]
    bh = sp_ref[9:10, :]

    x = x_ref[...]

    # Layer 1: Linear -> LayerNorm -> ReLU
    t = jnp.dot(x.astype(bf16), w1_ref[...], preferred_element_type=f32) + b1
    t = _ln_relu(t, g1, be1)

    # Layer 2: Linear -> LayerNorm -> ReLU
    t = jnp.dot(t.astype(bf16), w2_ref[...], preferred_element_type=f32) + b2
    t = _ln_relu(t, g2, be2)

    # Layer 3: Linear -> LayerNorm -> ReLU   (hidden_dim // 2)
    t = jnp.dot(t.astype(bf16), w3_ref[...], preferred_element_type=f32) + b3
    t = _ln_relu(t, g3, be3)

    # Fused heads: columns [0, a) = mean weights, [a, 2a) = log_std weights,
    # rest zero-padded so the output slab is a full multiple of 128 lanes.
    y = jnp.dot(t.astype(bf16), wh_ref[...], preferred_element_type=f32) + bh
    col = jax.lax.broadcasted_iota(jnp.int32, y.shape, 1)
    out_ref[...] = jnp.where(col < a, jnp.tanh(y), jnp.clip(y, -20.0, 2.0))


def actor_forward(state, params, *, tm=None):
    """Run the Actor forward pass. Returns (mean, log_std), each (B, action_dim)."""
    B, state_dim = state.shape
    h = params["w1"].shape[1]
    h2 = params["w3"].shape[1]
    a = params["action_dim"]
    out_pad = params["wh"].shape[1]          # lane-dense head width (mult of 128)
    sp = params["sp"]

    # Batch tile: 256 matches v6e/v7x MXU height; pass tm=128 on v5e if desired.
    if tm is None:
        tm = 256 if B >= 256 else _round_up(B, 8)
    b_pad = _round_up(B, tm)
    if b_pad != B:
        state = jnp.pad(state, ((0, b_pad - B), (0, 0)))
    grid = (b_pad // tm,)

    kernel = functools.partial(actor_kernel, h=h, h2=h2, a=a)

    out = pl.pallas_call(
        kernel,
        out_shape=jax.ShapeDtypeStruct((b_pad, out_pad), jnp.float32),
        grid_spec=pltpu.PrefetchScalarGridSpec(
            num_scalar_prefetch=0,
            grid=grid,
            in_specs=[
                pl.BlockSpec((tm, state_dim), lambda i: (i, 0)),   # state tile
                pl.BlockSpec(params["w1"].shape, lambda i: (0, 0)),  # resident
                pl.BlockSpec(params["w2"].shape, lambda i: (0, 0)),  # resident
                pl.BlockSpec(params["w3"].shape, lambda i: (0, 0)),  # resident
                pl.BlockSpec(params["wh"].shape, lambda i: (0, 0)),  # resident
                pl.BlockSpec(sp.shape, lambda i: (0, 0)),            # resident
            ],
            out_specs=pl.BlockSpec((tm, out_pad), lambda i: (i, 0)),
        ),
        compiler_params=pltpu.CompilerParams(
            dimension_semantics=("parallel",),
        ),
    )(state, params["w1"], params["w2"], params["w3"], params["wh"], sp)

    mean = out[:B, 0:a]
    log_std = out[:B, a:2 * a]
    return mean, log_std


def _orthogonal(key, out_dim, in_dim, gain=0.01):
    """Mimic torch.nn.init.orthogonal_ for a (out_dim, in_dim) weight."""
    rows, cols = out_dim, in_dim
    flat = jax.random.normal(key, (max(rows, cols), min(rows, cols)), jnp.float32)
    q, r = jnp.linalg.qr(flat)
    q = q * jnp.sign(jnp.diag(r))
    if rows < cols:
        q = q.T
    return gain * q[:rows, :cols]


def init_actor_params(key, state_dim, action_dim, hidden_dim=512):
    h, h2, a = hidden_dim, hidden_dim // 2, action_dim
    out_pad = max(128, _round_up(2 * a, 128))
    ks = jax.random.split(key, 5)

    # Linear weights: orthogonal(gain=0.01), stored transposed (in, out), bf16.
    w1 = _orthogonal(ks[0], h, state_dim).T
    w2 = _orthogonal(ks[1], h, h).T
    w3 = _orthogonal(ks[2], h2, h).T
    wm = _orthogonal(ks[3], a, h2).T   # (h2, a)
    ws = _orthogonal(ks[4], a, h2).T   # (h2, a)

    # Fused, zero-padded head weight: [mean | log_std | 0...], lane-dense.
    wh = jnp.zeros((h2, out_pad), jnp.float32)
    wh = wh.at[:, 0:a].set(wm).at[:, a:2 * a].set(ws)

    # Packed small params (all biases 0, LN gamma 1, LN beta 0, head bias 0).
    W = max(h, out_pad)
    sp = jnp.zeros((10, W), jnp.float32)
    sp = sp.at[1, 0:h].set(1.0)    # gamma1
    sp = sp.at[4, 0:h].set(1.0)    # gamma2
    sp = sp.at[7, 0:h2].set(1.0)   # gamma3

    return {
        "w1": w1.astype(jnp.bfloat16),
        "w2": w2.astype(jnp.bfloat16),
        "w3": w3.astype(jnp.bfloat16),
        "wh": wh.astype(jnp.bfloat16),
        "sp": sp,
        "action_dim": a,
    }


def actor_forward_ref(state, params):
    """Pure-JAX f32 reference (uses the same bf16-stored weights, upcast)."""
    a = params["action_dim"]
    h = params["w1"].shape[1]
    h2 = params["w3"].shape[1]
    sp = params["sp"]
    w1 = params["w1"].astype(jnp.float32)
    w2 = params["w2"].astype(jnp.float32)
    w3 = params["w3"].astype(jnp.float32)
    wh = params["wh"].astype(jnp.float32)

    def ln(x, g, b):
        mu = x.mean(-1, keepdims=True)
        var = ((x - mu) ** 2).mean(-1, keepdims=True)
        return (x - mu) / jnp.sqrt(var + LN_EPS) * g + b

    t = jax.nn.relu(ln(state @ w1 + sp[0, :h], sp[1, :h], sp[2, :h]))
    t = jax.nn.relu(ln(t @ w2 + sp[3, :h], sp[4, :h], sp[5, :h]))
    t = jax.nn.relu(ln(t @ w3 + sp[6, :h2], sp[7, :h2], sp[8, :h2]))
    y = t @ wh[:, :2 * a] + sp[9, :2 * a]
    mean = jnp.tanh(y[:, :a])
    log_std = jnp.clip(y[:, a:2 * a], -20.0, 2.0)
    return mean, log_std


if __name__ == "__main__":
    key = jax.random.PRNGKey(0)
    k_param, k_state, k_sp = jax.random.split(key, 3)

    # Small shapes consistent with the module: state_dim=16, action_dim=4,
    # hidden_dim=32 (-> hidden_dim//2 = 16), batch=2.
    batch, state_dim, action_dim, hidden_dim = 2, 16, 4, 32

    params = init_actor_params(k_param, state_dim, action_dim, hidden_dim)
    state = jax.random.normal(k_state, (batch, state_dim), jnp.float32)

    # Test 1: spec-faithful init (zero biases, unit gamma).
    mean, log_std = actor_forward(state, params)
    jax.block_until_ready((mean, log_std))
    mean_ref, log_std_ref = actor_forward_ref(state, params)
    assert mean.shape == (batch, action_dim)
    assert log_std.shape == (batch, action_dim)
    # bf16 matmul operands in-kernel vs f32 reference -> loosened tolerance.
    assert jnp.allclose(mean, mean_ref, atol=1e-2, rtol=1e-2)
    assert jnp.allclose(log_std, log_std_ref, atol=1e-2, rtol=1e-2)

    # Test 2: randomized biases / LN gamma / LN beta to exercise those paths.
    h, h2 = hidden_dim, hidden_dim // 2
    W = params["sp"].shape[1]
    sp_rand = 0.1 * jax.random.normal(k_sp, (10, W), jnp.float32)
    sp_rand = sp_rand.at[1, 0:h].add(1.0).at[4, 0:h].add(1.0).at[7, 0:h2].add(1.0)
    # zero out unused padded columns so kernel (padded) and ref (sliced) agree
    mask = jnp.zeros((10, W), jnp.float32)
    mask = mask.at[0:6, 0:h].set(1.0).at[6:9, 0:h2].set(1.0).at[9, 0:2 * action_dim].set(1.0)
    params2 = dict(params, sp=sp_rand * mask)
    mean2, log_std2 = actor_forward(state, params2)
    jax.block_until_ready((mean2, log_std2))
    mean2_ref, log_std2_ref = actor_forward_ref(state, params2)
    assert jnp.allclose(mean2, mean2_ref, atol=1e-2, rtol=1e-2)
    assert jnp.allclose(log_std2, log_std2_ref, atol=1e-2, rtol=1e-2)

    # TODO(synk): Actor.sample() (rsample + tanh-squashed log_prob) is a
    # stochastic method, not part of forward(); it is left to host-side JAX.

    print("KERNEL_OK")
</pallas_src>

<mosaic_0001>
module attributes {stable_mosaic.version = 11 : i64} {
  func.func @actor_kernel(%arg0: i32, %arg1: memref<8x16xf32, #tpu.memory_space<vmem>>, %arg2: memref<16x32xbf16, #tpu.memory_space<vmem>>, %arg3: memref<32x32xbf16, #tpu.memory_space<vmem>>, %arg4: memref<32x16xbf16, #tpu.memory_space<vmem>>, %arg5: memref<16x128xbf16, #tpu.memory_space<vmem>>, %arg6: memref<10x128xf32, #tpu.memory_space<vmem>>, %arg7: memref<8x128xf32, #tpu.memory_space<vmem>>) attributes {dimension_semantics = [#tpu.dimension_semantics<parallel>], iteration_bounds = array<i64: 1>, scalar_prefetch = 0 : i64, scratch_operands = 0 : i64, tpu.core_type = #tpu.core_type<tc>, window_params = [{transform_indices = @transform_0, window_bounds = array<i64: 8, 16>}, {pipeline_mode = #tpu.pipeline_mode<synchronous>, transform_indices = @transform_1, window_bounds = array<i64: 16, 32>}, {pipeline_mode = #tpu.pipeline_mode<synchronous>, transform_indices = @transform_2, window_bounds = array<i64: 32, 32>}, {pipeline_mode = #tpu.pipeline_mode<synchronous>, transform_indices = @transform_3, window_bounds = array<i64: 32, 16>}, {pipeline_mode = #tpu.pipeline_mode<synchronous>, transform_indices = @transform_4, window_bounds = array<i64: 16, 128>}, {pipeline_mode = #tpu.pipeline_mode<synchronous>, transform_indices = @transform_5, window_bounds = array<i64: 10, 128>}, {transform_indices = @transform_6, window_bounds = array<i64: 8, 128>}]} {
    %c0 = arith.constant 0 : index
    %c0_0 = arith.constant 0 : index
    %0 = vector.load %arg6[%c0, %c0_0] : memref<10x128xf32, #tpu.memory_space<vmem>>, vector<1x32xf32>
    %c1 = arith.constant 1 : index
    %c0_1 = arith.constant 0 : index
    %1 = vector.load %arg6[%c1, %c0_1] : memref<10x128xf32, #tpu.memory_space<vmem>>, vector<1x32xf32>
    %c2 = arith.constant 2 : index
    %c0_2 = arith.constant 0 : index
    %2 = vector.load %arg6[%c2, %c0_2] : memref<10x128xf32, #tpu.memory_space<vmem>>, vector<1x32xf32>
    %c3 = arith.constant 3 : index
    %c0_3 = arith.constant 0 : index
    %3 = vector.load %arg6[%c3, %c0_3] : memref<10x128xf32, #tpu.memory_space<vmem>>, vector<1x32xf32>
    %c4 = arith.constant 4 : index
    %c0_4 = arith.constant 0 : index
    %4 = vector.load %arg6[%c4, %c0_4] : memref<10x128xf32, #tpu.memory_space<vmem>>, vector<1x32xf32>
    %c5 = arith.constant 5 : index
    %c0_5 = arith.constant 0 : index
    %5 = vector.load %arg6[%c5, %c0_5] : memref<10x128xf32, #tpu.memory_space<vmem>>, vector<1x32xf32>
    %c6 = arith.constant 6 : index
    %c0_6 = arith.constant 0 : index
    %6 = vector.load %arg6[%c6, %c0_6] : memref<10x128xf32, #tpu.memory_space<vmem>>, vector<1x16xf32>
    %c7 = arith.constant 7 : index
    %c0_7 = arith.constant 0 : index
    %7 = vector.load %arg6[%c7, %c0_7] : memref<10x128xf32, #tpu.memory_space<vmem>>, vector<1x16xf32>
    %c8 = arith.constant 8 : index
    %c0_8 = arith.constant 0 : index
    %8 = vector.load %arg6[%c8, %c0_8] : memref<10x128xf32, #tpu.memory_space<vmem>>, vector<1x16xf32>
    %c9 = arith.constant 9 : index
    %c0_9 = arith.constant 0 : index
    %9 = vector.load %arg6[%c9, %c0_9] : memref<10x128xf32, #tpu.memory_space<vmem>>, vector<1x128xf32>
    %c0_10 = arith.constant 0 : index
    %c0_11 = arith.constant 0 : index
    %10 = vector.load %arg1[%c0_10, %c0_11] : memref<8x16xf32, #tpu.memory_space<vmem>>, vector<8x16xf32>
    %11 = arith.truncf %10 : vector<8x16xf32> to vector<8x16xbf16>
    %c0_12 = arith.constant 0 : index
    %c0_13 = arith.constant 0 : index
    %12 = vector.load %arg2[%c0_12, %c0_13] : memref<16x32xbf16, #tpu.memory_space<vmem>>, vector<16x32xbf16>
    %cst = arith.constant dense<0.000000e+00> : vector<8x32xf32>
    %13 = tpu.matmul %11, %12, %cst {dimension_numbers = #tpu.dot_dimension_numbers<[1], [0], [0], [1], [0, 0, 1, 1], [], []>} : vector<8x16xbf16>, vector<16x32xbf16>, vector<8x32xf32> -> vector<8x32xf32>
    %14 = vector.broadcast %0 : vector<1x32xf32> to vector<8x32xf32>
    %15 = arith.addf %13, %14 : vector<8x32xf32>
    %cst_14 = arith.constant dense<0.000000e+00> : vector<8xf32>
    %16 = vector.multi_reduction <add>, %15, %cst_14 [1] : vector<8x32xf32> to vector<8xf32>
    %17 = vector.shape_cast %16 : vector<8xf32> to vector<8x1xf32>
    %18 = arith.mulf %15, %15 : vector<8x32xf32>
    %cst_15 = arith.constant dense<0.000000e+00> : vector<8xf32>
    %19 = vector.multi_reduction <add>, %18, %cst_15 [1] : vector<8x32xf32> to vector<8xf32>
    %20 = vector.shape_cast %19 : vector<8xf32> to vector<8x1xf32>
    %cst_16 = arith.constant 3.125000e-02 : f32
    %21 = vector.broadcast %cst_16 : f32 to vector<8x1xf32>
    %22 = arith.mulf %17, %21 : vector<8x1xf32>
    %cst_17 = arith.constant 3.125000e-02 : f32
    %23 = vector.broadcast %cst_17 : f32 to vector<8x1xf32>
    %24 = arith.mulf %20, %23 : vector<8x1xf32>
    %25 = arith.mulf %22, %22 : vector<8x1xf32>
    %26 = arith.subf %24, %25 : vector<8x1xf32>
    %cst_18 = arith.constant 0.000000e+00 : f32
    %27 = vector.broadcast %cst_18 : f32 to vector<8x1xf32>
    %28 = arith.maximumf %26, %27 : vector<8x1xf32>
    %29 = vector.broadcast %22 : vector<8x1xf32> to vector<8x32xf32>
    %30 = arith.subf %15, %29 : vector<8x32xf32>
    %cst_19 = arith.constant 9.99999974E-6 : f32
    %31 = vector.broadcast %cst_19 : f32 to vector<8x1xf32>
    %32 = arith.addf %28, %31 : vector<8x1xf32>
    %33 = math.rsqrt %32 : vector<8x1xf32>
    %34 = vector.broadcast %33 : vector<8x1xf32> to vector<8x32xf32>
    %35 = arith.mulf %30, %34 : vector<8x32xf32>
    %36 = vector.broadcast %1 : vector<1x32xf32> to vector<8x32xf32>
    %37 = arith.mulf %35, %36 : vector<8x32xf32>
    %38 = vector.broadcast %2 : vector<1x32xf32> to vector<8x32xf32>
    %39 = arith.addf %37, %38 : vector<8x32xf32>
    %cst_20 = arith.constant 0.000000e+00 : f32
    %40 = vector.broadcast %cst_20 : f32 to vector<8x32xf32>
    %41 = arith.maximumf %39, %40 : vector<8x32xf32>
    %42 = arith.truncf %41 : vector<8x32xf32> to vector<8x32xbf16>
    %c0_21 = arith.constant 0 : index
    %c0_22 = arith.constant 0 : index
    %43 = vector.load %arg3[%c0_21, %c0_22] : memref<32x32xbf16, #tpu.memory_space<vmem>>, vector<32x32xbf16>
    %cst_23 = arith.constant dense<0.000000e+00> : vector<8x32xf32>
    %44 = tpu.matmul %42, %43, %cst_23 {dimension_numbers = #tpu.dot_dimension_numbers<[1], [0], [0], [1], [0, 0, 1, 1], [], []>} : vector<8x32xbf16>, vector<32x32xbf16>, vector<8x32xf32> -> vector<8x32xf32>
    %45 = vector.broadcast %3 : vector<1x32xf32> to vector<8x32xf32>
    %46 = arith.addf %44, %45 : vector<8x32xf32>
    %cst_24 = arith.constant dense<0.000000e+00> : vector<8xf32>
    %47 = vector.multi_reduction <add>, %46, %cst_24 [1] : vector<8x32xf32> to vector<8xf32>
    %48 = vector.shape_cast %47 : vector<8xf32> to vector<8x1xf32>
    %49 = arith.mulf %46, %46 : vector<8x32xf32>
    %cst_25 = arith.constant dense<0.000000e+00> : vector<8xf32>
    %50 = vector.multi_reduction <add>, %49, %cst_25 [1] : vector<8x32xf32> to vector<8xf32>
    %51 = vector.shape_cast %50 : vector<8xf32> to vector<8x1xf32>
    %cst_26 = arith.constant 3.125000e-02 : f32
    %52 = vector.broadcast %cst_26 : f32 to vector<8x1xf32>
    %53 = arith.mulf %48, %52 : vector<8x1xf32>
    %cst_27 = arith.constant 3.125000e-02 : f32
    %54 = vector.broadcast %cst_27 : f32 to vector<8x1xf32>
    %55 = arith.mulf %51, %54 : vector<8x1xf32>
    %56 = arith.mulf %53, %53 : vector<8x1xf32>
    %57 = arith.subf %55, %56 : vector<8x1xf32>
    %cst_28 = arith.constant 0.000000e+00 : f32
    %58 = vector.broadcast %cst_28 : f32 to vector<8x1xf32>
    %59 = arith.maximumf %57, %58 : vector<8x1xf32>
    %60 = vector.broadcast %53 : vector<8x1xf32> to vector<8x32xf32>
    %61 = arith.subf %46, %60 : vector<8x32xf32>
    %cst_29 = arith.constant 9.99999974E-6 : f32
    %62 = vector.broadcast %cst_29 : f32 to vector<8x1xf32>
    %63 = arith.addf %59, %62 : vector<8x1xf32>
    %64 = math.rsqrt %63 : vector<8x1xf32>
    %65 = vector.broadcast %64 : vector<8x1xf32> to vector<8x32xf32>
    %66 = arith.mulf %61, %65 : vector<8x32xf32>
    %67 = vector.broadcast %4 : vector<1x32xf32> to vector<8x32xf32>
    %68 = arith.mulf %66, %67 : vector<8x32xf32>
    %69 = vector.broadcast %5 : vector<1x32xf32> to vector<8x32xf32>
    %70 = arith.addf %68, %69 : vector<8x32xf32>
    %cst_30 = arith.constant 0.000000e+00 : f32
    %71 = vector.broadcast %cst_30 : f32 to vector<8x32xf32>
    %72 = arith.maximumf %70, %71 : vector<8x32xf32>
    %73 = arith.truncf %72 : vector<8x32xf32> to vector<8x32xbf16>
    %c0_31 = arith.constant 0 : index
    %c0_32 = arith.constant 0 : index
    %74 = vector.load %arg4[%c0_31, %c0_32] : memref<32x16xbf16, #tpu.memory_space<vmem>>, vector<32x16xbf16>
    %cst_33 = arith.constant dense<0.000000e+00> : vector<8x16xf32>
    %75 = tpu.matmul %73, %74, %cst_33 {dimension_numbers = #tpu.dot_dimension_numbers<[1], [0], [0], [1], [0, 0, 1, 1], [], []>} : vector<8x32xbf16>, vector<32x16xbf16>, vector<8x16xf32> -> vector<8x16xf32>
    %76 = vector.broadcast %6 : vector<1x16xf32> to vector<8x16xf32>
    %77 = arith.addf %75, %76 : vector<8x16xf32>
    %cst_34 = arith.constant dense<0.000000e+00> : vector<8xf32>
    %78 = vector.multi_reduction <add>, %77, %cst_34 [1] : vector<8x16xf32> to vector<8xf32>
    %79 = vector.shape_cast %78 : vector<8xf32> to vector<8x1xf32>
    %80 = arith.mulf %77, %77 : vector<8x16xf32>
    %cst_35 = arith.constant dense<0.000000e+00> : vector<8xf32>
    %81 = vector.multi_reduction <add>, %80, %cst_35 [1] : vector<8x16xf32> to vector<8xf32>
    %82 = vector.shape_cast %81 : vector<8xf32> to vector<8x1xf32>
    %cst_36 = arith.constant 6.250000e-02 : f32
    %83 = vector.broadcast %cst_36 : f32 to vector<8x1xf32>
    %84 = arith.mulf %79, %83 : vector<8x1xf32>
    %cst_37 = arith.constant 6.250000e-02 : f32
    %85 = vector.broadcast %cst_37 : f32 to vector<8x1xf32>
    %86 = arith.mulf %82, %85 : vector<8x1xf32>
    %87 = arith.mulf %84, %84 : vector<8x1xf32>
    %88 = arith.subf %86, %87 : vector<8x1xf32>
    %cst_38 = arith.constant 0.000000e+00 : f32
    %89 = vector.broadcast %cst_38 : f32 to vector<8x1xf32>
    %90 = arith.maximumf %88, %89 : vector<8x1xf32>
    %91 = vector.broadcast %84 : vector<8x1xf32> to vector<8x16xf32>
    %92 = arith.subf %77, %91 : vector<8x16xf32>
    %cst_39 = arith.constant 9.99999974E-6 : f32
    %93 = vector.broadcast %cst_39 : f32 to vector<8x1xf32>
    %94 = arith.addf %90, %93 : vector<8x1xf32>
    %95 = math.rsqrt %94 : vector<8x1xf32>
    %96 = vector.broadcast %95 : vector<8x1xf32> to vector<8x16xf32>
    %97 = arith.mulf %92, %96 : vector<8x16xf32>
    %98 = vector.broadcast %7 : vector<1x16xf32> to vector<8x16xf32>
    %99 = arith.mulf %97, %98 : vector<8x16xf32>
    %100 = vector.broadcast %8 : vector<1x16xf32> to vector<8x16xf32>
    %101 = arith.addf %99, %100 : vector<8x16xf32>
    %cst_40 = arith.constant 0.000000e+00 : f32
    %102 = vector.broadcast %cst_40 : f32 to vector<8x16xf32>
    %103 = arith.maximumf %101, %102 : vector<8x16xf32>
    %104 = arith.truncf %103 : vector<8x16xf32> to vector<8x16xbf16>
    %c0_41 = arith.constant 0 : index
    %c0_42 = arith.constant 0 : index
    %105 = vector.load %arg5[%c0_41, %c0_42] : memref<16x128xbf16, #tpu.memory_space<vmem>>, vector<16x128xbf16>
    %cst_43 = arith.constant dense<0.000000e+00> : vector<8x128xf32>
    %106 = tpu.matmul %104, %105, %cst_43 {dimension_numbers = #tpu.dot_dimension_numbers<[1], [0], [0], [1], [0, 0, 1, 1], [], []>} : vector<8x16xbf16>, vector<16x128xbf16>, vector<8x128xf32> -> vector<8x128xf32>
    %107 = vector.broadcast %9 : vector<1x128xf32> to vector<8x128xf32>
    %108 = arith.addf %106, %107 : vector<8x128xf32>
    %109 = tpu.iota {dimensions = array<i32: 1>} : vector<8x128xi32>
    %c4_i32 = arith.constant 4 : i32
    %110 = vector.broadcast %c4_i32 : i32 to vector<8x128xi32>
    %111 = arith.cmpi slt, %109, %110 : vector<8x128xi32>
    %112 = math.tanh %108 : vector<8x128xf32>
    %cst_44 = arith.constant -2.000000e+01 : f32
    %cst_45 = arith.constant 2.000000e+00 : f32
    %113 = vector.broadcast %cst_44 : f32 to vector<8x128xf32>
    %114 = arith.maximumf %113, %108 : vector<8x128xf32>
    %115 = vector.broadcast %cst_45 : f32 to vector<8x128xf32>
    %116 = arith.minimumf %115, %114 : vector<8x128xf32>
    %117 = arith.select %111, %112, %116 : vector<8x128xi1>, vector<8x128xf32>
    %c0_46 = arith.constant 0 : index
    %c0_47 = arith.constant 0 : index
    %118 = vector.load %arg7[%c0_46, %c0_47] : memref<8x128xf32, #tpu.memory_space<vmem>>, vector<8x128xf32>
    tpu.vector_store %arg7[%c0_46, %c0_47], %117 {strides = array<i32>} : memref<8x128xf32, #tpu.memory_space<vmem>>, vector<8x128xf32>,
    return
  }
  func.func @transform_0(%arg0: i32) -> (i32, i32) {
    %c0_i32 = arith.constant 0 : i32
    %c0_i32_0 = arith.constant 0 : i32
    return %arg0, %c0_i32 : i32, i32
  }
  func.func @transform_1(%arg0: i32) -> (i32, i32) {
    %c0_i32 = arith.constant 0 : i32
    %c0_i32_0 = arith.constant 0 : i32
    %c0_i32_1 = arith.constant 0 : i32
    return %c0_i32, %c0_i32_0 : i32, i32
  }
  func.func @transform_2(%arg0: i32) -> (i32, i32) {
    %c0_i32 = arith.constant 0 : i32
    %c0_i32_0 = arith.constant 0 : i32
    %c0_i32_1 = arith.constant 0 : i32
    return %c0_i32, %c0_i32_0 : i32, i32
  }
  func.func @transform_3(%arg0: i32) -> (i32, i32) {
    %c0_i32 = arith.constant 0 : i32
    %c0_i32_0 = arith.constant 0 : i32
    %c0_i32_1 = arith.constant 0 : i32
    return %c0_i32, %c0_i32_0 : i32, i32
  }
  func.func @transform_4(%arg0: i32) -> (i32, i32) {
    %c0_i32 = arith.constant 0 : i32
    %c0_i32_0 = arith.constant 0 : i32
    %c0_i32_1 = arith.constant 0 : i32
    return %c0_i32, %c0_i32_0 : i32, i32
  }
  func.func @transform_5(%arg0: i32) -> (i32, i32) {
    %c0_i32 = arith.constant 0 : i32
    %c0_i32_0 = arith.constant 0 : i32
    %c0_i32_1 = arith.constant 0 : i32
    return %c0_i32, %c0_i32_0 : i32, i32
  }
  func.func @transform_6(%arg0: i32) -> (i32, i32) {
    %c0_i32 = arith.constant 0 : i32
    %c0_i32_0 = arith.constant 0 : i32
    return %arg0, %c0_i32 : i32, i32
  }
}

</mosaic_0001>

<llo_original>
// kernel: tpu_custom_call.1
$region0: #{tpu_custom_call.1}
  #allocation0 [shape = 'u32[]', space=smem, size = 0x4, offset = 0x4, fixed_abs, tag = 'smem constant byte address 0x4 - core index']
  #allocation1 [shape = 'u32[72,128]{1,0:T(1,128)}', space=vmem, size = 0x9000, scoped, tag = 'internal scratch']
  %s0 = inlined_call_operand.vmem [shape: f32[8,16], index: 0, kind: input, shape index: {}]
  %s1 = inlined_call_operand.hbm [shape: bf16[16,32], index: 1, kind: input, shape index: {}]
  %s2 = inlined_call_operand.vmem [shape: bf16[32,32], index: 2, kind: input, shape index: {}]
  %s3 = inlined_call_operand.vmem [shape: bf16[32,16], index: 3, kind: input, shape index: {}]
  %s4 = inlined_call_operand.hbm [shape: bf16[16,128], index: 4, kind: input, shape index: {}]
  %s5 = inlined_call_operand.hbm [shape: f32[10,128], index: 5, kind: input, shape index: {}]
  %s6 = inlined_call_operand.hbm [shape: f32[8,128], index: 6, kind: output, shape index: {}]
  %s7 = sld [smem:[#allocation0]]
  $region46: #{tpu_custom_call.1} parent=0
    _
  %s9 = ssub.s32 1, %s7
  %s10 = scalar_select 0, %s9, %s7
  $region1: #{tpu_custom_call.1} parent=0
    #allocation2 [shape = 'u8[4096]{0}', space=vmem, size = 0x1000, scoped, tag = 'input window, operand 1, single buffered']
    #allocation3 [shape = 's32[1]{0}', space=sflag, size = 0x4, scoped, tag = 'scoped memory for tpu_custom_call.1']
    #allocation4 [shape = 's32[1]{0}', space=sflag, size = 0x4, scoped, tag = 'scoped memory for tpu_custom_call.1']
    #allocation5 [shape = 'u8[4096]{0}', space=vmem, size = 0x1000, scoped, tag = 'input window, operand 4, single buffered']
    #allocation6 [shape = 's32[1]{0}', space=sflag, size = 0x4, scoped, tag = 'scoped memory for tpu_custom_call.1']
    #allocation7 [shape = 'u8[8192]{0}', space=vmem, size = 0x2000, scoped, tag = 'input window, operand 5, single buffered']
    #allocation8 [shape = 'u8[4096]{0}', space=vmem, size = 0x1000, scoped, tag = 'output window, operand 0, single buffered']
    %11 = vsyncpa [#allocation3], 0
    %12 = vsyncpa [#allocation6], 0
    %13 = vsyncpa [#allocation4], 0
    // Predicated region
    $region2: #{tpu_custom_call.1} parent=1 // pred_check
      _
    $region3: #{tpu_custom_call.1} parent=1 // pred_check_branch
      %15 = sbr.rel (0) target = $region5
    $region4: #{tpu_custom_call.1} parent=1 // pred_region
      _
    $region5: #{tpu_custom_call.1} parent=1 // pred_fallthru
      _
    // Predicated region
    $region6: #{tpu_custom_call.1} parent=1 // pred_check
      _
    $region7: #{tpu_custom_call.1} parent=1 // pred_check_branch
      %17 = sbr.rel (0) target = $region9
    $region8: #{tpu_custom_call.1} parent=1 // pred_region
      %19 = vsyncadd [#allocation3], 0
      %s20 = sshll.u32 %s1, 4
      %s21 = int_to_ptr.hbm [resolvable:$true] %s20
      %s22 = sshll.u32 [#allocation2], 4
      %s23 = int_to_ptr.vmem [resolvable:$true] %s22
      %28 = dma.hbm_to_vmem [thread:$0]  %s21, 128, %s23, [#allocation3], 64, 64, 4
    $region9: #{tpu_custom_call.1} parent=1 // pred_fallthru
      _
    // Predicated region
    $region10: #{tpu_custom_call.1} parent=1 // pred_check
      _
    $region11: #{tpu_custom_call.1} parent=1 // pred_check_branch
      %30 = sbr.rel (0) target = $region13
    $region12: #{tpu_custom_call.1} parent=1 // pred_region
      _
    $region13: #{tpu_custom_call.1} parent=1 // pred_fallthru
      _
    // Predicated region
    $region14: #{tpu_custom_call.1} parent=1 // pred_check
      _
    $region15: #{tpu_custom_call.1} parent=1 // pred_check_branch
      %32 = sbr.rel (0) target = $region17
    $region16: #{tpu_custom_call.1} parent=1 // pred_region
      _
    $region17: #{tpu_custom_call.1} parent=1 // pred_fallthru
      _
    // Predicated region
    $region18: #{tpu_custom_call.1} parent=1 // pred_check
      _
    $region19: #{tpu_custom_call.1} parent=1 // pred_check_branch
      %34 = sbr.rel (0) target = $region21
    $region20: #{tpu_custom_call.1} parent=1 // pred_region
      %36 = vsyncadd [#allocation6], 0
      %s37 = sshll.u32 %s4, 4
      %s38 = int_to_ptr.hbm [resolvable:$true] %s37
      %s39 = sshll.u32 [#allocation5], 4
      %s40 = int_to_ptr.vmem [resolvable:$true] %s39
      %45 = dma.hbm_to_vmem [thread:$0]  %s38, 128, %s40, [#allocation6], 64, 64, 4
    $region21: #{tpu_custom_call.1} parent=1 // pred_fallthru
      _
    // Predicated region
    $region22: #{tpu_custom_call.1} parent=1 // pred_check
      _
    $region23: #{tpu_custom_call.1} parent=1 // pred_check_branch
      %47 = sbr.rel (0) target = $region25
    $region24: #{tpu_custom_call.1} parent=1 // pred_region
      %49 = vsyncadd [#allocation6], 0
      %s50 = sshll.u32 %s5, 4
      %s51 = int_to_ptr.hbm [resolvable:$true] %s50
      %s52 = sshll.u32 [#allocation7], 4
      %s53 = int_to_ptr.vmem [resolvable:$true] %s52
      %58 = dma.hbm_to_vmem [thread:$0]  %s51, 256, %s53, [#allocation6], 128, 128, 8
    $region25: #{tpu_custom_call.1} parent=1 // pred_fallthru
      _
    // Predicated region
    $region26: #{tpu_custom_call.1} parent=1 // pred_check
      _
    $region27: #{tpu_custom_call.1} parent=1 // pred_check_branch
      %60 = sbr.rel (0) target = $region29
    $region28: #{tpu_custom_call.1} parent=1 // pred_region
      %62 = dma.done [#allocation3], 128
    $region29: #{tpu_custom_call.1} parent=1 // pred_fallthru
      _
    // Predicated region
    $region30: #{tpu_custom_call.1} parent=1 // pred_check
      _
    $region31: #{tpu_custom_call.1} parent=1 // pred_check_branch
      %64 = sbr.rel (0) target = $region33
    $region32: #{tpu_custom_call.1} parent=1 // pred_region
      %66 = dma.done [#allocation6], 128
    $region33: #{tpu_custom_call.1} parent=1 // pred_fallthru
      _
    // Predicated region
    $region34: #{tpu_custom_call.1} parent=1 // pred_check
      _
    $region35: #{tpu_custom_call.1} parent=1 // pred_check_branch
      %68 = sbr.rel (0) target = $region37
    $region36: #{tpu_custom_call.1} parent=1 // pred_region
      %70 = dma.done [#allocation6], 256
    $region37: #{tpu_custom_call.1} parent=1 // pred_fallthru
      _
    %v72 = vld [vmem:[#allocation7] sm:$0x1]
    %v73 = vld [vmem:[#allocation7 + $0x1] sm:$0x1]
    %v74 = vld [vmem:[#allocation7 + $0x2] sm:$0x1]
    %v75 = vld [vmem:[#allocation7 + $0x3] sm:$0x1]
    %v76 = vld [vmem:[#allocation7 + $0x4] sm:$0x1]
    %v77 = vld [vmem:[#allocation7 + $0x5] sm:$0x1]
    %v78 = vld [vmem:[#allocation7 + $0x6] sm:$0x1]
    %v79 = vld [vmem:[#allocation7 + $0x7] sm:$0x1]
    %v80 = vld [vmem:[#allocation7 + $0x8] sm:$0x1]
    %v81 = vld [vmem:[#allocation7 + $0x9] sm:$0x1]
    %v82 = vld [vmem:[%s0] sm:$0xff]
    %v83 = vpack.c.bf16 %v82, %v82
    %v84 = vld [vmem:[#allocation2] sm:$0xf]
    %v85 = vld [vmem:[#allocation2 + $0x4] sm:$0xf]
    %v86 = vperm.slane %v72, 0
    %v89 = vunpack.c.l.b16 %v84
    %v90 = vunpack.c.l.b16 %v85
    %v91 = vpack.c.b16 %v90, %v89
    %vm93 = vcmask 130048
    %v95 = vsel %vm93, %v83, 0
    %97 = vmatpush.bf16.msra.mxu0 0
    %98 = vmatpush.bf16.msra.mxu0 0
    %99 = vmatpush.bf16.msra.mxu0 0
    %100 = vmatpush.bf16.msra.mxu0 0
    %101 = vmatpush.bf16.msra.mxu0 0
    %102 = vmatpush.bf16.msra.mxu0 0
    %103 = vmatpush.bf16.msra.mxu0 0
    %104 = vmatpush.bf16.msra.mxu0 %v91
    %105 = vmatmul.bf16.gmra.mxu0 %v95
    %v106 = vpop.f32.mrf.mxu0
    %v107 = vadd.f32 %v86, %v106
    %v108 = vpop.f32.mrf.mxu0
    %109 = vdwg.mxu0
    %vm110 = vcmask 261120
    %v111 = vsel %vm110, %v107, 0.0
    %112 = vadd.xlane.f32.xlu0 %v111
    %v113 = vpop.xlane.xlu0 %112
    %v114 = vmul.f32 %v107, %v107
    %v115 = vsel %vm110, %v114, 0.0
    %116 = vadd.xlane.f32.xlu0 %v115
    %v117 = vpop.xlane.xlu0 %116
    %v118 = vmul.f32 %v113, 0.03125
    %v119 = vmul.f32 %v117, 0.03125
    %v120 = vmul.f32 %v118, %v118
    %v121 = vsub.f32 %v119, %v120
    %v122 = vmax.f32 %v121, 0.0
    %v123 = vsub.f32 %v107, %v118
    %v124 = vadd.f32 %v122, 1e-05
    %v125 = vrsqrt.pop %v124
    %v126 = vmul.f32 %v125, %v124
    %v127 = vmul.f32 %v126, %v125
    %v128 = vmul.f32 0.5, %v127
    %v129 = vsub.f32 1.5, %v128
    %v130 = vmul.f32 %v125, %v129
    %vm131 = vweird.f32 %v124
    %vm132 = vweird.f32 %v125
    %vm133 = vmor %vm131, %vm132
    %v134 = vsel %vm133, %v125, %v130
    %v135 = vmul.f32 %v123, %v134
    %v136 = vperm.slane %v73, 0
    %v137 = vmul.f32 %v135, %v136
    %v138 = vperm.slane %v74, 0
    %v139 = vadd.f32 %v137, %v138
    %v140 = vmax.f32 %v139, 0.0
    %v141 = vpack.c.bf16 %v140, %v140
    %v142 = vld [vmem:[%s2] sm:$0xf]
    %v143 = vld [vmem:[%s2 + $0x4] sm:$0xf]
    %v144 = vld [vmem:[%s2 + $0x8] sm:$0xf]
    %v145 = vld [vmem:[%s2 + $0xc] sm:$0xf]
    %v146 = vperm.slane %v75, 0
    %v151 = vunpack.c.l.b16 %v142
    %v152 = vunpack.c.l.b16 %v143
    %v153 = vunpack.c.l.b16 %v144
    %v154 = vunpack.c.l.b16 %v145
    %v155 = vpack.c.b16 %v152, %v151
    %v156 = vpack.c.b16 %v154, %v153
    %v160 = vsel %vm110, %v141, 0
    %162 = vmatpush.bf16.msra.mxu0 0
    %163 = vmatpush.bf16.msra.mxu0 0
    %164 = vmatpush.bf16.msra.mxu0 0
    %165 = vmatpush.bf16.msra.mxu0 0
    %166 = vmatpush.bf16.msra.mxu0 0
    %167 = vmatpush.bf16.msra.mxu0 0
    %168 = vmatpush.bf16.msra.mxu0 %v156
    %169 = vmatpush.bf16.msra.mxu0 %v155
    %170 = vmatmul.bf16.gmra.mxu0 %v160
    %v171 = vpop.f32.mrf.mxu0
    %v172 = vadd.f32 %v146, %v171
    %v173 = vpop.f32.mrf.mxu0
    %174 = vdwg.mxu0
    %v175 = vsel %vm110, %v172, 0.0
    %176 = vadd.xlane.f32.xlu0 %v175
    %v177 = vpop.xlane.xlu0 %176
    %v178 = vmul.f32 %v172, %v172
    %v179 = vsel %vm110, %v178, 0.0
    %180 = vadd.xlane.f32.xlu0 %v179
    %v181 = vpop.xlane.xlu0 %180
    %v182 = vmul.f32 %v177, 0.03125
    %v183 = vmul.f32 %v181, 0.03125
    %v184 = vmul.f32 %v182, %v182
    %v185 = vsub.f32 %v183, %v184
    %v186 = vmax.f32 %v185, 0.0
    %v187 = vsub.f32 %v172, %v182
    %v188 = vadd.f32 %v186, 1e-05
    %v189 = vrsqrt.pop %v188
    %v190 = vmul.f32 %v189, %v188
    %v191 = vmul.f32 %v190, %v189
    %v192 = vmul.f32 0.5, %v191
    %v193 = vsub.f32 1.5, %v192
    %v194 = vmul.f32 %v189, %v193
    %vm195 = vweird.f32 %v188
    %vm196 = vweird.f32 %v189
    %vm197 = vmor %vm195, %vm196
    %v198 = vsel %vm197, %v189, %v194
    %v199 = vmul.f32 %v187, %v198
    %v200 = vperm.slane %v76, 0
    %v201 = vmul.f32 %v199, %v200
    %v202 = vperm.slane %v77, 0
    %v203 = vadd.f32 %v201, %v202
    %v204 = vmax.f32 %v203, 0.0
    %v205 = vpack.c.bf16 %v204, %v204
    %v206 = vld [vmem:[%s3] sm:$0xf]
    %v207 = vld [vmem:[%s3 + $0x4] sm:$0xf]
    %v208 = vld [vmem:[%s3 + $0x8] sm:$0xf]
    %v209 = vld [vmem:[%s3 + $0xc] sm:$0xf]
    %v210 = vperm.slane %v78, 0
    %v215 = vunpack.c.l.b16 %v206
    %v216 = vunpack.c.l.b16 %v207
    %v217 = vunpack.c.l.b16 %v208
    %v218 = vunpack.c.l.b16 %v209
    %v219 = vpack.c.b16 %v216, %v215
    %v220 = vpack.c.b16 %v218, %v217
    %v224 = vsel %vm110, %v205, 0
    %226 = vmatpush.bf16.msra.mxu0 0
    %227 = vmatpush.bf16.msra.mxu0 0
    %228 = vmatpush.bf16.msra.mxu0 0
    %229 = vmatpush.bf16.msra.mxu0 0
    %230 = vmatpush.bf16.msra.mxu0 0
    %231 = vmatpush.bf16.msra.mxu0 0
    %232 = vmatpush.bf16.msra.mxu0 %v220
    %233 = vmatpush.bf16.msra.mxu0 %v219
    %234 = vmatmul.bf16.gmra.mxu0 %v224
    %v235 = vpop.f32.mrf.mxu0
    %v236 = vadd.f32 %v210, %v235
    %v237 = vpop.f32.mrf.mxu0
    %238 = vdwg.mxu0
    %v239 = vsel %vm93, %v236, 0.0
    %240 = vadd.xlane.f32.xlu0 %v239
    %v241 = vpop.xlane.xlu0 %240
    %v242 = vmul.f32 %v236, %v236
    %v243 = vsel %vm93, %v242, 0.0
    %244 = vadd.xlane.f32.xlu0 %v243
    %v245 = vpop.xlane.xlu0 %244
    %v246 = vmul.f32 %v241, 0.0625
    %v247 = vmul.f32 %v245, 0.0625
    %v248 = vmul.f32 %v246, %v246
    %v249 = vsub.f32 %v247, %v248
    %v250 = vmax.f32 %v249, 0.0
    %v251 = vsub.f32 %v236, %v246
    %v252 = vadd.f32 %v250, 1e-05
    %v253 = vrsqrt.pop %v252
    %v254 = vmul.f32 %v253, %v252
    %v255 = vmul.f32 %v254, %v253
    %v256 = vmul.f32 0.5, %v255
    %v257 = vsub.f32 1.5, %v256
    %v258 = vmul.f32 %v253, %v257
    %vm259 = vweird.f32 %v252
    %vm260 = vweird.f32 %v253
    %vm261 = vmor %vm259, %vm260
    %v262 = vsel %vm261, %v253, %v258
    %v263 = vmul.f32 %v251, %v262
    %v264 = vperm.slane %v79, 0
    %v265 = vmul.f32 %v263, %v264
    %v266 = vperm.slane %v80, 0
    %v267 = vadd.f32 %v265, %v266
    %v268 = vmax.f32 %v267, 0.0
    %v269 = vpack.c.bf16 %v268, %v268
    %v270 = vld [vmem:[#allocation5] sm:$0xf]
    %v271 = vld [vmem:[#allocation5 + $0x4] sm:$0xf]
    %v272 = vperm.slane %v81, 0
    %v275 = vunpack.c.l.b16 %v270
    %v276 = vunpack.c.l.b16 %v271
    %v277 = vpack.c.b16 %v276, %v275
    %v280 = vsel %vm93, %v269, 0
    %282 = vmatpush.bf16.msra.mxu0 0
    %283 = vmatpush.bf16.msra.mxu0 0
    %284 = vmatpush.bf16.msra.mxu0 0
    %285 = vmatpush.bf16.msra.mxu0 0
    %286 = vmatpush.bf16.msra.mxu0 0
    %287 = vmatpush.bf16.msra.mxu0 0
    %288 = vmatpush.bf16.msra.mxu0 0
    %289 = vmatpush.bf16.msra.mxu0 %v277
    %290 = vmatmul.bf16.gmra.mxu0 %v280
    %v291 = vpop.f32.mrf.mxu0
    %v292 = vadd.f32 %v272, %v291
    %v293 = vpop.f32.mrf.mxu0
    %294 = vdwg.mxu0
    %v295 = vlaneseq
    %v296 = vand.u32 %v295, 127
    %vm297 = vcmp.lt.s32.totalorder %v296, 4
    %v298 = vtanh.pop %v292
    %v299 = vmax.f32 %v292, -20.0
    %v300 = vmin.f32 %v299, 2.0
    %v301 = vsel %vm297, %v298, %v300
    %302 = vst [vmem:[#allocation8] sm:$0xff] %v301
    // Predicated region
    $region38: #{tpu_custom_call.1} parent=1 // pred_check
      _
    $region39: #{tpu_custom_call.1} parent=1 // pred_check_branch
      %304 = sbr.rel (0) target = $region41
    $region40: #{tpu_custom_call.1} parent=1 // pred_region
      %306 = vsyncadd [#allocation4], 0
      %s308 = sshll.u32 [#allocation8], 4
      %s309 = int_to_ptr.vmem [resolvable:$true] %s308
      %s310 = sshll.u32 %s6, 4
      %s311 = int_to_ptr.hbm [resolvable:$true] %s310
      %313 = dma.vmem_to_hbm [thread:$0]  %s309, 128, %s311, [#allocation4]
    $region41: #{tpu_custom_call.1} parent=1 // pred_fallthru
      _
    // Predicated region
    $region42: #{tpu_custom_call.1} parent=1 // pred_check
      _
    $region43: #{tpu_custom_call.1} parent=1 // pred_check_branch
      %315 = sbr.rel (0) target = $region45
    $region44: #{tpu_custom_call.1} parent=1 // pred_region
      %317 = dma.done [#allocation4], 128
    $region45: #{tpu_custom_call.1} parent=1 // pred_fallthru
      _
    %318 = vsyncpa [#allocation3], 1
    %319 = vsyncpa [#allocation6], 1
    %320 = vsyncpa [#allocation4], 1

</llo_original>
